<compile_context>
chip_gen: v6e
topology: v6e:2x2x1
jax: 0.10.0
libtpu: 0.0.40
codegen_flags: <defaults>
</compile_context>

<pallas_src>
import functools

import jax
import jax.numpy as jnp
from jax.experimental import pallas as pl
from jax.experimental.pallas import tpu as pltpu


def _round_up(x, m):
    return ((x + m - 1) // m) * m


def linear_kernel(x_ref, wt_ref, b_ref, o_ref):
    # x_ref: (TB, D_in); wt_ref: (D_in, D_out); b_ref: (1, D_out); o_ref: (TB, D_out)
    # Native (M,K)x(K,N) MXU feed; f32 accumulation regardless of input dtype.
    acc = jnp.dot(x_ref[...], wt_ref[...], preferred_element_type=jnp.float32)
    # Bias add in f32 (v5e VPU has no bf16); cast only at the store.
    o_ref[...] = (acc + b_ref[...]).astype(o_ref.dtype)


def prepare_muril_params(weight, bias, *, compute_dtype=jnp.bfloat16):
    """One-time parameter baking (do this at init, not per forward call).

    Args:
      weight: (D_out, D_in)  PyTorch nn.Linear layout.
      bias:   (D_out,)
      compute_dtype: streaming dtype for weight/activations (bf16 recommended;
        accumulation is always f32).
    Returns:
      w_t:      (D_in, D_out) in compute_dtype (transposed for native MXU feed).
      bias_row: (1, D_out)    float32.
    """
    w_t = jnp.asarray(weight).T.astype(compute_dtype)
    bias_row = jnp.asarray(bias).reshape(1, -1).astype(jnp.float32)
    return w_t, bias_row


def muril_classifier_forward(x, w_t, bias_row, *, block_b=None):
    """Pallas implementation of MuRILClassifier.forward (a single Linear layer).

    Args:
      x:        (B, D_in)   activations (any float dtype; cast to w_t.dtype for streaming).
      w_t:      (D_in, D_out) pre-transposed weight from prepare_muril_params.
      bias_row: (1, D_out)  float32 bias from prepare_muril_params.
    Returns:
      (B, D_out) float32 logits == x @ weight.T + bias.
    """
    B, D_in = x.shape
    D_in_w, D_out = w_t.shape
    assert D_in == D_in_w, "feature-dim mismatch between x and prepared weight"

    # Stream activations at the weight's precision (bf16 halves HBM bytes; the
    # cast fuses with the upstream producer under jit, or is a no-op if the
    # caller already supplies bf16).
    x = x.astype(w_t.dtype)
    itemsize = jnp.dtype(w_t.dtype).itemsize

    # Batch tile:
    #  * cap at 1024 rows for f32 (v5e 16 MiB scoped-VMEM default), 2048 for
    #    bf16 (fits v6e/v7x 32 MiB scoped default; v7x only has 64 MiB VMEM).
    #  * at least 2 grid steps when B permits, so "parallel" can use both
    #    TensorCores on v7x.
    tb_cap = block_b if block_b is not None else (2048 if itemsize <= 2 else 1024)
    tb = min(tb_cap, max(8, _round_up(pl.cdiv(B, 2), 8)))
    grid = (pl.cdiv(B, tb),)

    flops = 2 * B * D_in * D_out
    bytes_accessed = (
        B * D_in * itemsize            # x
        + D_in * D_out * itemsize      # weight (resident, read once)
        + D_out * 4                    # bias
        + B * D_out * 4                # output
    )

    out = pl.pallas_call(
        linear_kernel,
        out_shape=jax.ShapeDtypeStruct((B, D_out), jnp.float32),
        grid_spec=pltpu.PrefetchScalarGridSpec(
            num_scalar_prefetch=0,
            grid=grid,
            in_specs=[
                pl.BlockSpec((tb, D_in), lambda i: (i, 0)),      # x: tiled over batch
                pl.BlockSpec((D_in, D_out), lambda i: (0, 0)),   # weight: resident in VMEM
                pl.BlockSpec((1, D_out), lambda i: (0, 0)),      # bias: resident in VMEM
            ],
            # Full-extent last dim: no pad columns, no post-kernel slice pass.
            out_specs=pl.BlockSpec((tb, D_out), lambda i: (i, 0)),
        ),
        compiler_params=pltpu.CompilerParams(
            # Batch steps are independent -> shardable across v7x's 2 TensorCores.
            dimension_semantics=("parallel",),
        ),
        cost_estimate=pl.CostEstimate(
            flops=flops, transcendentals=0, bytes_accessed=bytes_accessed
        ),
    )(x, w_t, bias_row)
    return out


if __name__ == "__main__":
    # Small shapes consistent with the module's forward:
    #   x: (batch, input_dim); Linear(input_dim -> output_dim)
    batch = 8
    input_dim = 32
    output_dim = 8

    key = jax.random.PRNGKey(0)
    kx, kw, kb = jax.random.split(key, 3)

    x = jax.random.normal(kx, (batch, input_dim), dtype=jnp.float32)
    # Deterministic synthetic parameters (shapes from nn.Linear(input_dim, output_dim))
    weight = jax.random.normal(kw, (output_dim, input_dim), dtype=jnp.float32) * 0.02
    bias = jax.random.normal(kb, (output_dim,), dtype=jnp.float32) * 0.01

    # One-time parameter prep (transpose + bf16 cast), then the kernel call.
    w_t, bias_row = prepare_muril_params(weight, bias, compute_dtype=jnp.bfloat16)
    y = muril_classifier_forward(x, w_t, bias_row)
    y = jax.block_until_ready(y)
    assert y.shape == (batch, output_dim)

    # Tight check against a reference that uses the same bf16-rounded inputs
    # (f32 accumulation in both paths).
    x_r = x.astype(jnp.bfloat16).astype(jnp.float32)
    w_r = weight.astype(jnp.bfloat16).astype(jnp.float32)
    y_ref_bf16 = x_r @ w_r.T + bias
    assert jnp.allclose(y, y_ref_bf16, atol=1e-4, rtol=1e-4)

    # Loose semantic check against the exact f32 nn.Linear (bf16 input rounding only).
    y_ref_f32 = x @ weight.T + bias
    assert jnp.allclose(y, y_ref_f32, atol=5e-2, rtol=5e-2)

    # Exact-precision path also supported (matches f32 reference tightly).
    w_t32, bias_row32 = prepare_muril_params(weight, bias, compute_dtype=jnp.float32)
    y32 = jax.block_until_ready(muril_classifier_forward(x, w_t32, bias_row32))
    assert jnp.allclose(y32, y_ref_f32, atol=1e-5, rtol=1e-5)

    print("KERNEL_OK")
</pallas_src>

<mosaic_0001>
module attributes {stable_mosaic.version = 11 : i64} {
  func.func @linear_kernel(%arg0: i32, %arg1: memref<8x32xbf16, #tpu.memory_space<vmem>>, %arg2: memref<32x8xbf16, #tpu.memory_space<vmem>>, %arg3: memref<1x8xf32, #tpu.memory_space<vmem>>, %arg4: memref<8x8xf32, #tpu.memory_space<vmem>>) attributes {dimension_semantics = [#tpu.dimension_semantics<parallel>], iteration_bounds = array<i64: 1>, scalar_prefetch = 0 : i64, scratch_operands = 0 : i64, tpu.core_type = #tpu.core_type<tc>, window_params = [{transform_indices = @transform_0, window_bounds = array<i64: 8, 32>}, {pipeline_mode = #tpu.pipeline_mode<synchronous>, transform_indices = @transform_1, window_bounds = array<i64: 32, 8>}, {pipeline_mode = #tpu.pipeline_mode<synchronous>, transform_indices = @transform_2, window_bounds = array<i64: 1, 8>}, {transform_indices = @transform_3, window_bounds = array<i64: 8, 8>}]} {
    %c0 = arith.constant 0 : index
    %c0_0 = arith.constant 0 : index
    %0 = vector.load %arg1[%c0, %c0_0] : memref<8x32xbf16, #tpu.memory_space<vmem>>, vector<8x32xbf16>
    %c0_1 = arith.constant 0 : index
    %c0_2 = arith.constant 0 : index
    %1 = vector.load %arg2[%c0_1, %c0_2] : memref<32x8xbf16, #tpu.memory_space<vmem>>, vector<32x8xbf16>
    %cst = arith.constant dense<0.000000e+00> : vector<8x8xf32>
    %2 = tpu.matmul %0, %1, %cst {dimension_numbers = #tpu.dot_dimension_numbers<[1], [0], [0], [1], [0, 0, 1, 1], [], []>} : vector<8x32xbf16>, vector<32x8xbf16>, vector<8x8xf32> -> vector<8x8xf32>
    %c0_3 = arith.constant 0 : index
    %c0_4 = arith.constant 0 : index
    %3 = vector.load %arg3[%c0_3, %c0_4] : memref<1x8xf32, #tpu.memory_space<vmem>>, vector<1x8xf32>
    %4 = vector.broadcast %3 : vector<1x8xf32> to vector<8x8xf32>
    %5 = arith.addf %2, %4 : vector<8x8xf32>
    %c0_5 = arith.constant 0 : index
    %c0_6 = arith.constant 0 : index
    %6 = vector.load %arg4[%c0_5, %c0_6] : memref<8x8xf32, #tpu.memory_space<vmem>>, vector<8x8xf32>
    tpu.vector_store %arg4[%c0_5, %c0_6], %5 {strides = array<i32>} : memref<8x8xf32, #tpu.memory_space<vmem>>, vector<8x8xf32>,
    return
  }
  func.func @transform_0(%arg0: i32) -> (i32, i32) {
    %c0_i32 = arith.constant 0 : i32
    %c0_i32_0 = arith.constant 0 : i32
    return %arg0, %c0_i32 : i32, i32
  }
  func.func @transform_1(%arg0: i32) -> (i32, i32) {
    %c0_i32 = arith.constant 0 : i32
    %c0_i32_0 = arith.constant 0 : i32
    %c0_i32_1 = arith.constant 0 : i32
    return %c0_i32, %c0_i32_0 : i32, i32
  }
  func.func @transform_2(%arg0: i32) -> (i32, i32) {
    %c0_i32 = arith.constant 0 : i32
    %c0_i32_0 = arith.constant 0 : i32
    %c0_i32_1 = arith.constant 0 : i32
    return %c0_i32, %c0_i32_0 : i32, i32
  }
  func.func @transform_3(%arg0: i32) -> (i32, i32) {
    %c0_i32 = arith.constant 0 : i32
    %c0_i32_0 = arith.constant 0 : i32
    return %arg0, %c0_i32 : i32, i32
  }
}

</mosaic_0001>

<llo_original>
// kernel: tpu_custom_call.1
$region0: #{tpu_custom_call.1}
  #allocation0 [shape = 'u32[]', space=smem, size = 0x4, offset = 0x4, fixed_abs, tag = 'smem constant byte address 0x4 - core index']
  #allocation1 [shape = 'u32[144,128]{1,0:T(1,128)}', space=vmem, size = 0x12000, scoped, tag = 'internal scratch']
  %s0 = inlined_call_operand.vmem [shape: bf16[8,32], index: 0, kind: input, shape index: {}]
  %s1 = inlined_call_operand.vmem [shape: bf16[32,8], index: 1, kind: input, shape index: {}]
  %s2 = inlined_call_operand.vmem [shape: f32[1,8], index: 2, kind: input, shape index: {}]
  %s3 = inlined_call_operand.hbm [shape: f32[8,8], index: 3, kind: output, shape index: {}]
  %s4 = sld [smem:[#allocation0]]
  $region22: #{tpu_custom_call.1} parent=0
    _
  %s6 = ssub.s32 1, %s4
  %s7 = scalar_select 0, %s6, %s4
  $region1: #{tpu_custom_call.1} parent=0
    #allocation2 [shape = 'u8[4096]{0}', space=vmem, size = 0x1000, scoped, tag = 'output window, operand 0, single buffered']
    #allocation3 [shape = 's32[1]{0}', space=sflag, size = 0x4, scoped, tag = 'scoped memory for tpu_custom_call.1']
    %8 = vsyncpa [#allocation3], 0
    // Predicated region
    $region2: #{tpu_custom_call.1} parent=1 // pred_check
      _
    $region3: #{tpu_custom_call.1} parent=1 // pred_check_branch
      %10 = sbr.rel (0) target = $region5
    $region4: #{tpu_custom_call.1} parent=1 // pred_region
      _
    $region5: #{tpu_custom_call.1} parent=1 // pred_fallthru
      _
    // Predicated region
    $region6: #{tpu_custom_call.1} parent=1 // pred_check
      _
    $region7: #{tpu_custom_call.1} parent=1 // pred_check_branch
      %12 = sbr.rel (0) target = $region9
    $region8: #{tpu_custom_call.1} parent=1 // pred_region
      _
    $region9: #{tpu_custom_call.1} parent=1 // pred_fallthru
      _
    // Predicated region
    $region10: #{tpu_custom_call.1} parent=1 // pred_check
      _
    $region11: #{tpu_custom_call.1} parent=1 // pred_check_branch
      %14 = sbr.rel (0) target = $region13
    $region12: #{tpu_custom_call.1} parent=1 // pred_region
      _
    $region13: #{tpu_custom_call.1} parent=1 // pred_fallthru
      _
    %v16 = vld [vmem:[%s0] sm:$0xf]
    %v17 = vld [vmem:[%s1] sm:$0xf]
    %v18 = vld [vmem:[%s1 + $0x4] sm:$0xf]
    %v19 = vld [vmem:[%s1 + $0x8] sm:$0xf]
    %v20 = vld [vmem:[%s1 + $0xc] sm:$0xf]
    %v21 = vld [vmem:[%s2] sm:$0x1]
    %v23 = vlaneseq
    %v24 = vshrl.u32 %v23, 7
    %v25 = vsub.s32 0, %v24
    %v26 = vrot.slane %v21, %v25
    %v32 = vunpack.c.l.b16 %v17
    %v33 = vunpack.c.l.b16 %v18
    %v34 = vunpack.c.l.b16 %v19
    %v35 = vunpack.c.l.b16 %v20
    %v36 = vpack.c.b16 %v33, %v32
    %v37 = vpack.c.b16 %v35, %v34
    %vm40 = vcmask 261120
    %v42 = vsel %vm40, %v16, 0
    %44 = vmatprep.subr.bf16.mxu0 0
    %45 = vmatpush1.bf16.msra.mxu0 0
    %46 = vmatprep.subr.bf16.mxu0 0
    %47 = vmatpush1.bf16.msra.mxu0 0
    %48 = vmatprep.subr.bf16.mxu0 0
    %49 = vmatpush1.bf16.msra.mxu0 0
    %50 = vmatprep.subr.bf16.mxu0 0
    %51 = vmatpush1.bf16.msra.mxu0 0
    %52 = vmatprep.subr.bf16.mxu0 0
    %53 = vmatpush1.bf16.msra.mxu0 0
    %54 = vmatprep.subr.bf16.mxu0 0
    %55 = vmatpush1.bf16.msra.mxu0 0
    %56 = vmatprep.subr.bf16.mxu0 0
    %57 = vmatpush1.bf16.msra.mxu0 %v37
    %58 = vmatprep.subr.bf16.mxu0 0
    %59 = vmatpush1.bf16.msra.mxu0 %v36
    %60 = vmatprep.subr.bf16.mxu0 0
    %61 = vmatpush2.bf16.msra.mxu0 0
    %62 = vmatprep.subr.bf16.mxu0 0
    %63 = vmatpush2.bf16.msra.mxu0 0
    %64 = vmatprep.subr.bf16.mxu0 0
    %65 = vmatpush2.bf16.msra.mxu0 0
    %66 = vmatprep.subr.bf16.mxu0 0
    %67 = vmatpush2.bf16.msra.mxu0 0
    %68 = vmatprep.subr.bf16.mxu0 0
    %69 = vmatpush2.bf16.msra.mxu0 0
    %70 = vmatprep.subr.bf16.mxu0 0
    %71 = vmatpush2.bf16.msra.mxu0 0
    %72 = vmatprep.subr.bf16.mxu0 0
    %73 = vmatpush2.bf16.msra.mxu0 0
    %74 = vmatprep.subr.bf16.mxu0 0
    %75 = vmatpush2.bf16.msra.mxu0 0
    %76 = vmatprep.mubr.bf16.mxu0 0
    %77 = vmatmul.mubr.bf16.gmra.mxu0 %v42
    %v78 = vpop.f32.mrf.mxu0
    %v79 = vadd.f32 %v26, %v78
    %v80 = vpop.f32.mrf.mxu0
    %v81 = vpop.f32.mrf.mxu0
    %v82 = vpop.f32.mrf.mxu0
    %83 = vdwg.mxu0
    %vm84 = vcmask 64512
    %85 = vst.msk [vmem:[#allocation2] sm:$0xff] %vm84, %v79
    // Predicated region
    $region14: #{tpu_custom_call.1} parent=1 // pred_check
      _
    $region15: #{tpu_custom_call.1} parent=1 // pred_check_branch
      %87 = sbr.rel (0) target = $region17
    $region16: #{tpu_custom_call.1} parent=1 // pred_region
      %s89 = ssub.s32 128, 128
      %90 = vsyncadd [#allocation3], %s89
      %s92 = sshll.u32 [#allocation2], 4
      %s93 = int_to_ptr.vmem [resolvable:$true] %s92
      %95 = dma.vmem_to_hbm [thread:$0]  %s93, 128, %s3, [#allocation3]
    $region17: #{tpu_custom_call.1} parent=1 // pred_fallthru
      _
    // Predicated region
    $region18: #{tpu_custom_call.1} parent=1 // pred_check
      _
    $region19: #{tpu_custom_call.1} parent=1 // pred_check_branch
      %97 = sbr.rel (0) target = $region21
    $region20: #{tpu_custom_call.1} parent=1 // pred_region
      %98 = dma.done [#allocation3], 128
    $region21: #{tpu_custom_call.1} parent=1 // pred_fallthru
      _
    %99 = vsyncpa [#allocation3], 1

</llo_original>
